<compile_context>
chip_gen: v5e
topology: v5e:2x2
jax: 0.10.0
libtpu: 0.0.40
codegen_flags: <defaults>
</compile_context>

<pallas_src>
import functools

import jax
import jax.numpy as jnp
from jax.experimental import pallas as pl
from jax.experimental.pallas import tpu as pltpu


_FAST_PATH_BYTES = 128 * 1024          # below this, plain XLA beats pallas_call
_BLOCK_BUDGET_BYTES = 8 * 1024 * 1024  # per-block (input tile + output tile)
_MIN_GRID_BLOCKS = 4                   # keep the pipeline & both v7x TCs busy


def _norm_kernel(x_ref, p_ref, o_ref):
    """o = x * scale_row + bias_row, broadcast along the lane axis."""
    x = x_ref[...].astype(jnp.float32)      # (tm, tn) f32 math on the VPU
    p = p_ref[...]                          # (tm, 2) f32: [:,0]=1/std, [:,1]=-mean/std
    s = p[:, 0:1]
    b = p[:, 1:2]
    o_ref[...] = (x * s + b).astype(o_ref.dtype)


def _ceil_div(a, b):
    return -(-a // b)


def _round_down_128(x):
    return max(128, (x // 128) * 128)


def _choose_tiles(M, N, in_item, out_item):
    """Pick (tm, tn): large, (8,128)-legal, VMEM-safe, with enough grid blocks."""
    # Row (sublane) tile: big 8-multiple, or the full dim when M is small
    # (full-dim blocks are always legal; cdiv grid masks the row tail).
    tm = 256 if M >= 256 else M

    # Lane tile cap from the combined in+out byte budget for one block.
    per_row_bytes = tm * (in_item + out_item)
    tn_cap = _round_down_128(_BLOCK_BUDGET_BYTES // max(per_row_bytes, 1))

    if N <= 128:
        tn = N                              # full lane dim; cannot split further
    else:
        tn = min(N, tn_cap)
        # Enforce a minimum number of blocks so DMA/compute overlap and v7x
        # megacore sharding actually happen (grid=(1,1) => fully serial).
        row_blocks = _ceil_div(M, tm)
        if row_blocks * _ceil_div(N, tn) < _MIN_GRID_BLOCKS:
            want_cols = _ceil_div(_MIN_GRID_BLOCKS, row_blocks)
            tn = _round_down_128(_ceil_div(N, want_cols))
    return tm, tn


def _normalize_pallas(x2d, sb, out_dtype):
    """x2d: (M, N) native dtype; sb: (M, 2) f32 [scale, bias]. Returns (M, N)."""
    M, N = x2d.shape
    in_item = x2d.dtype.itemsize
    out_item = jnp.dtype(out_dtype).itemsize
    tm, tn = _choose_tiles(M, N, in_item, out_item)
    grid = (pl.cdiv(M, tm), pl.cdiv(N, tn))

    # Double-buffered in+out tiles (+ margin); stays under v7x's 64 MiB physical.
    block_bytes = tm * tn * (in_item + out_item)
    vmem_limit = int(min(48 * 1024 * 1024,
                         max(32 * 1024 * 1024, 2 * block_bytes + (4 << 20))))

    cost = pl.CostEstimate(
        flops=2 * M * N,
        transcendentals=0,
        bytes_accessed=M * N * (in_item + out_item) + M * 2 * 4,
    )

    return pl.pallas_call(
        _norm_kernel,
        out_shape=jax.ShapeDtypeStruct((M, N), out_dtype),
        grid=grid,
        in_specs=[
            pl.BlockSpec((tm, tn), lambda i, j: (i, j)),   # image tile
            pl.BlockSpec((tm, 2), lambda i, j: (i, 0)),    # per-row (scale, bias)
        ],
        out_specs=pl.BlockSpec((tm, tn), lambda i, j: (i, j)),
        compiler_params=pltpu.CompilerParams(
            # Pure elementwise: both grid axes independent -> megacore-shardable.
            dimension_semantics=("parallel", "parallel"),
            vmem_limit_bytes=vmem_limit,
        ),
        cost_estimate=cost,
    )(x2d, sb)


@functools.partial(jax.jit, static_argnames=("out_dtype",))
def _normalization_fwd(x4d, scale, bias, out_dtype):
    B, C, H, W = x4d.shape
    M, N = B * C, H * W

    # Free (contiguous) reshape to a lane-dense 2-D slab; no extra HBM traffic.
    x2d = x4d.reshape(M, N)
    # Tiny packed per-row parameter table (B*C, 2) f32: [scale, bias].
    sb = jnp.stack([scale, bias], axis=-1)                 # (C, 2)
    sb = jnp.broadcast_to(sb[None], (B, C, 2)).reshape(M, 2)

    if M * N * x2d.dtype.itemsize <= _FAST_PATH_BYTES:
        # Tiny image: fixed pallas_call overhead dominates; fused XLA is as fast.
        y2d = (x2d.astype(jnp.float32) * sb[:, 0:1] + sb[:, 1:2]).astype(out_dtype)
    else:
        y2d = _normalize_pallas(x2d, sb, out_dtype)
    return y2d.reshape(B, C, H, W)


class Normalization:
    """JAX/Pallas port of the PyTorch Normalization module.

    out_dtype=None (default) preserves the input floating dtype (bf16 in ->
    bf16 out, halving store traffic); pass out_dtype=jnp.float32 to force the
    PyTorch-style widened output for sub-f32 inputs.
    """

    def __init__(self, mean, std, out_dtype=None):
        mean = jnp.asarray(mean, jnp.float32).reshape(-1)
        std = jnp.asarray(std, jnp.float32).reshape(-1)
        # Mirror torch's .view(-1, 1, 1) attributes.
        self.mean = mean.reshape(-1, 1, 1)
        self.std = std.reshape(-1, 1, 1)
        # Kernel-side constants: (x - mean)/std == x * (1/std) + (-mean/std).
        self._scale = 1.0 / std
        self._bias = -mean / std
        self._out_dtype = out_dtype

    def __call__(self, img):
        x = img
        squeeze = x.ndim == 3
        if squeeze:                 # (C, H, W) -> add batch dim
            x = x[None]
        assert x.ndim == 4, "expected (B, C, H, W) or (C, H, W) input"
        assert x.shape[1] == self._scale.shape[0], "channel mismatch"

        if self._out_dtype is not None:
            out_dtype = jnp.dtype(self._out_dtype)
        elif jnp.issubdtype(x.dtype, jnp.floating):
            out_dtype = jnp.dtype(x.dtype)
        else:
            out_dtype = jnp.dtype(jnp.float32)

        y = _normalization_fwd(x, self._scale, self._bias, out_dtype=out_dtype)
        if squeeze:
            y = y[0]
        return y


if __name__ == "__main__":
    key = jax.random.PRNGKey(0)

    # ImageNet mean/std from the original module (3 channels).
    mean = jnp.array([0.485, 0.456, 0.406], dtype=jnp.float32)
    std = jnp.array([0.229, 0.224, 0.225], dtype=jnp.float32)
    norm = Normalization(mean, std)

    # ---- Pallas path: large enough to exceed the small-input fast path ----
    B, C, H, W = 2, 3, 128, 128
    img = jax.random.uniform(key, (B, C, H, W), dtype=jnp.float32)
    out = jax.block_until_ready(norm(img))
    ref = (img - mean.reshape(-1, 1, 1)) / std.reshape(-1, 1, 1)
    assert out.shape == img.shape and out.dtype == ref.dtype
    assert jnp.allclose(out, ref, rtol=1e-5, atol=1e-5), float(
        jnp.max(jnp.abs(out - ref)))

    # ---- 3-D (C, H, W) input, also through the Pallas kernel ----
    out3 = jax.block_until_ready(norm(img[0]))
    assert jnp.allclose(out3, ref[0], rtol=1e-5, atol=1e-5)

    # ---- tiny-image fast path (plain XLA elementwise) ----
    img_s = jax.random.uniform(jax.random.PRNGKey(1), (2, 3, 16, 16),
                               dtype=jnp.float32)
    out_s = jax.block_until_ready(norm(img_s))
    ref_s = (img_s - mean.reshape(-1, 1, 1)) / std.reshape(-1, 1, 1)
    assert out_s.shape == img_s.shape and out_s.dtype == ref_s.dtype
    assert jnp.allclose(out_s, ref_s, rtol=1e-5, atol=1e-5)

    print("KERNEL_OK")
</pallas_src>

<mosaic_0001>
module attributes {stable_mosaic.version = 11 : i64} {
  func.func @_norm_kernel(%arg0: i32, %arg1: i32, %arg2: memref<6x4096xf32, #tpu.memory_space<vmem>>, %arg3: memref<6x2xf32, #tpu.memory_space<vmem>>, %arg4: memref<6x4096xf32, #tpu.memory_space<vmem>>) attributes {dimension_semantics = [#tpu.dimension_semantics<parallel>, #tpu.dimension_semantics<parallel>], iteration_bounds = array<i64: 1, 4>, scalar_prefetch = 0 : i64, scratch_operands = 0 : i64, tpu.core_type = #tpu.core_type<tc>, window_params = [{transform_indices = @transform_0, window_bounds = array<i64: 6, 4096>}, {transform_indices = @transform_1, window_bounds = array<i64: 6, 2>}, {transform_indices = @transform_2, window_bounds = array<i64: 6, 4096>}]} {
    %c0 = arith.constant 0 : index
    %c0_0 = arith.constant 0 : index
    %0 = vector.load %arg2[%c0, %c0_0] : memref<6x4096xf32, #tpu.memory_space<vmem>>, vector<6x4096xf32>
    %c0_1 = arith.constant 0 : index
    %c0_2 = arith.constant 0 : index
    %1 = vector.load %arg3[%c0_1, %c0_2] : memref<6x2xf32, #tpu.memory_space<vmem>>, vector<6x2xf32>
    %2 = vector.extract_strided_slice %1 {offsets = [0, 0], sizes = [6, 1], strides = [1, 1]} : vector<6x2xf32> to vector<6x1xf32>
    %3 = vector.extract_strided_slice %1 {offsets = [0, 1], sizes = [6, 1], strides = [1, 1]} : vector<6x2xf32> to vector<6x1xf32>
    %4 = vector.broadcast %2 : vector<6x1xf32> to vector<6x4096xf32>
    %5 = arith.mulf %0, %4 : vector<6x4096xf32>
    %6 = vector.broadcast %3 : vector<6x1xf32> to vector<6x4096xf32>
    %7 = arith.addf %5, %6 : vector<6x4096xf32>
    %c0_3 = arith.constant 0 : index
    %c0_4 = arith.constant 0 : index
    %8 = vector.load %arg4[%c0_3, %c0_4] : memref<6x4096xf32, #tpu.memory_space<vmem>>, vector<6x4096xf32>
    tpu.vector_store %arg4[%c0_3, %c0_4], %7 {strides = array<i32>} : memref<6x4096xf32, #tpu.memory_space<vmem>>, vector<6x4096xf32>,
    return
  }
  func.func @transform_0(%arg0: i32, %arg1: i32) -> (i32, i32) {
    %c0_i32 = arith.constant 0 : i32
    return %arg0, %arg1 : i32, i32
  }
  func.func @transform_1(%arg0: i32, %arg1: i32) -> (i32, i32) {
    %c0_i32 = arith.constant 0 : i32
    %c0_i32_0 = arith.constant 0 : i32
    return %arg0, %c0_i32 : i32, i32
  }
  func.func @transform_2(%arg0: i32, %arg1: i32) -> (i32, i32) {
    %c0_i32 = arith.constant 0 : i32
    return %arg0, %arg1 : i32, i32
  }
}

</mosaic_0001>

<llo_original>
// kernel: _normalization_fwd.1
$region0: #{_normalization_fwd.1}
  #allocation0 [shape = 'u32[]', space=smem, size = 0x4, offset = 0x4, fixed_abs, tag = 'smem constant byte address 0x4 - core index']
  #allocation1 [shape = 'u32[72,128]{1,0:T(1,128)}', space=vmem, size = 0x9000, scoped, tag = 'internal scratch']
  %s0 = inlined_call_operand.vmem [shape: f32[6,16384], index: 0, kind: input, shape index: {}]
  %s1 = inlined_call_operand.vmem [shape: f32[6,2], index: 1, kind: input, shape index: {}]
  %s2 = inlined_call_operand.vmem [shape: f32[6,16384], index: 2, kind: output, shape index: {}]
  %s3 = sld [smem:[#allocation0]]
  $region41: #{_normalization_fwd.1} parent=0
    _
  %s5 = ssub.s32 1, %s3
  %s6 = scalar_select 0, %s5, %s3
  loop: start=0, step=1, limit=6
  $region2: #{_normalization_fwd.1} parent=0 // loop_pre_header
    _
  $region3: #{_normalization_fwd.1} parent=0 // loop_header
    %s8 = sphi 0, %s12
    %p9 = scmp.ge.s32.totalorder %s8, 6
    %s15 = sphi 0, %s27
    %s16 = sphi 0, %s23
    %s17 = sphi 0, %s15
    %s18 = sphi 0, %s16
    %s19 = sphi 0, %s17
    %s20 = sphi 0, %s18
    %s32 = sphi 0, %s34
    %s35 = sphi 0, %s32
    %s36 = sphi 0, %s35
    %s52 = sphi 0, %s36
    %s58 = sphi 0, %s60
    %s61 = sphi 0, %s58
    %s62 = sphi 0, %s61
    %s78 = sphi 0, %s62
    %s86 = sphi 0, %s88
    %s89 = sphi 0, %s86
    %s90 = sphi 0, %s89
    %s106 = sphi 0, %s90
  $region4: #{_normalization_fwd.1} parent=0 // loop_header_branch
    %11 = sbr.rel (%p9) target = $region8
  $region5: #{_normalization_fwd.1} parent=0 // loop_body
    %s13 = ssub.s32 %s8, 1
    %s14 = ssub.s32 %s8, 2
    %s21 = sadd.s32 1, %s16
    %p22 = scmp.ge.s32.totalorder %s21, 4
    %s23 = scalar_select %p22, 0, %s21
    %s24 = sadd.s32 1, %s15
    %s25 = scalar_select %p22, %s24, %s15
    %p26 = scmp.ge.s32.totalorder %s25, 1
    %s27 = scalar_select %p26, 0, %s25
    %s28 = ssub.s32 %s15, %s27
    %s29 = ssub.s32 %s16, %s23
    %s30 = sor.u32 %s28, %s29
    %p31 = scmp.eq.s32.totalorder %s30, 0
    %s33 = sadd.s32 %s32, 1
    %s34 = scalar_select %p31, %s32, %s33
    %p37 = pneg %p31
    %p38 = scmp.eq.s32.totalorder %s8, 3
    %p39 = por %p37, %p38
    %p40 = scmp.ne.s32.totalorder %s32, %s35
    %p41 = scmp.eq.s32.totalorder %s8, 0
    %p42 = por %p40, %p41
    %p43 = scmp.ne.s32.totalorder %s32, %s35
    %p44 = scmp.eq.s32.totalorder %s13, 3
    %p45 = por %p43, %p44
    %p46 = scmp.ne.s32.totalorder %s35, %s36
    %p47 = scmp.eq.s32.totalorder %s13, 0
    %p48 = por %p46, %p47
    %p49 = scmp.ne.s32.totalorder %s35, %s36
    %p50 = scmp.eq.s32.totalorder %s14, 3
    %p51 = por %p49, %p50
    %p53 = scmp.ne.s32.totalorder %s36, %s52
    %p54 = scmp.eq.s32.totalorder %s14, 0
    %p55 = por %p53, %p54
    %s56 = ssub.s32 %s15, %s27
    %p57 = scmp.eq.s32.totalorder %s56, 0
    %s59 = sadd.s32 %s58, 1
    %s60 = scalar_select %p57, %s58, %s59
    %p63 = pneg %p57
    %p64 = scmp.eq.s32.totalorder %s8, 3
    %p65 = por %p63, %p64
    %p66 = scmp.ne.s32.totalorder %s58, %s61
    %p67 = scmp.eq.s32.totalorder %s8, 0
    %p68 = por %p66, %p67
    %p69 = scmp.ne.s32.totalorder %s58, %s61
    %p70 = scmp.eq.s32.totalorder %s13, 3
    %p71 = por %p69, %p70
    %p72 = scmp.ne.s32.totalorder %s61, %s62
    %p73 = scmp.eq.s32.totalorder %s13, 0
    %p74 = por %p72, %p73
    %p75 = scmp.ne.s32.totalorder %s61, %s62
    %p76 = scmp.eq.s32.totalorder %s14, 3
    %p77 = por %p75, %p76
    %p79 = scmp.ne.s32.totalorder %s62, %s78
    %p80 = scmp.eq.s32.totalorder %s14, 0
    %p81 = por %p79, %p80
    %s82 = ssub.s32 %s15, %s27
    %s83 = ssub.s32 %s16, %s23
    %s84 = sor.u32 %s82, %s83
    %p85 = scmp.eq.s32.totalorder %s84, 0
    %s87 = sadd.s32 %s86, 1
    %s88 = scalar_select %p85, %s86, %s87
    %p91 = pneg %p85
    %p92 = scmp.eq.s32.totalorder %s8, 3
    %p93 = por %p91, %p92
    %p94 = scmp.ne.s32.totalorder %s86, %s89
    %p95 = scmp.eq.s32.totalorder %s8, 0
    %p96 = por %p94, %p95
    %p97 = scmp.ne.s32.totalorder %s86, %s89
    %p98 = scmp.eq.s32.totalorder %s13, 3
    %p99 = por %p97, %p98
    %p100 = scmp.ne.s32.totalorder %s89, %s90
    %p101 = scmp.eq.s32.totalorder %s13, 0
    %p102 = por %p100, %p101
    %p103 = scmp.ne.s32.totalorder %s89, %s90
    %p104 = scmp.eq.s32.totalorder %s14, 3
    %p105 = por %p103, %p104
    %p107 = scmp.ne.s32.totalorder %s90, %s106
    %p108 = scmp.eq.s32.totalorder %s14, 0
    %p109 = por %p107, %p108
    %p110 = scmp.le.s32.totalorder 1, %s8
    %p111 = scmp.lt.s32.totalorder %s8, 5
    %p112 = pnand %p110, %p111
    %p113 = pneg %p112
    // Predicated region
    $region9: #{_normalization_fwd.1} parent=5 // pred_check
      _
    $region10: #{_normalization_fwd.1} parent=5 // pred_check_branch
      %115 = sbr.rel (%p112) target = $region12
    $region11: #{_normalization_fwd.1} parent=5 // pred_region
      %s116 = ssub.s32 %s8, 1
      // Predicated region
      $region13: #{_normalization_fwd.1} parent=11 // pred_check
        %p117 = pneg %p74
      $region14: #{_normalization_fwd.1} parent=11 // pred_check_branch
        %119 = sbr.rel (%p117) target = $region16
      $region15: #{_normalization_fwd.1} parent=11 // pred_region
        %p120 = scmp.lt.s32.totalorder %s17, 0
        %s121 = scalar_select %p120, %s17, 0
        %s122 = smul.addr %s121, 8
        %s123 = scalar_lea.vmem %s1, %s122
      $region16: #{_normalization_fwd.1} parent=11 // pred_fallthru
        _
    $region12: #{_normalization_fwd.1} parent=5 // pred_fallthru
      _
    %p124 = scmp.lt.s32.totalorder %s8, 4
    // Predicated region
    $region17: #{_normalization_fwd.1} parent=5 // pred_check
      %p125 = pneg %p124
    $region18: #{_normalization_fwd.1} parent=5 // pred_check_branch
      %127 = sbr.rel (%p125) target = $region20
    $region19: #{_normalization_fwd.1} parent=5 // pred_region
      // Predicated region
      $region21: #{_normalization_fwd.1} parent=19 // pred_check
        %p128 = pneg %p42
      $region22: #{_normalization_fwd.1} parent=19 // pred_check_branch
        %130 = sbr.rel (%p128) target = $region24
      $region23: #{_normalization_fwd.1} parent=19 // pred_region
        %s131 = smul.u32 32, %s16
        %p132 = scmp.lt.s32.totalorder %s15, 0
        %s133 = scalar_select %p132, %s15, 0
        %p134 = scmp.lt.s32.totalorder %s131, 127
        %s135 = scalar_select %p134, %s131, 127
        %s136 = smul.addr %s133, 128
        %s137 = sadd.s32 %s135, %s136
        %s138 = smul.addr %s137, 8
        %s139 = scalar_lea.vmem %s0, %s138
        %s140 = smul.u32 32, %s16
      $region24: #{_normalization_fwd.1} parent=19 // pred_fallthru
        _
    $region20: #{_normalization_fwd.1} parent=5 // pred_fallthru
      _
    %p141 = scmp.le.s32.totalorder 1, %s8
    %p142 = scmp.lt.s32.totalorder %s8, 5
    %p143 = pnand %p141, %p142
    %p144 = pneg %p143
    // Predicated region
    $region25: #{_normalization_fwd.1} parent=5 // pred_check
      _
    $region26: #{_normalization_fwd.1} parent=5 // pred_check_branch
      %146 = sbr.rel (%p143) target = $region28
    $region27: #{_normalization_fwd.1} parent=5 // pred_region
      %s147 = ssub.s32 %s8, 1
      %s148 = smul.u32 32, %s18
      %p149 = scmp.lt.s32.totalorder %s17, 0
      %s150 = scalar_select %p149, %s17, 0
      %p151 = scmp.lt.s32.totalorder %s148, 127
      %s152 = scalar_select %p151, %s148, 127
      %s153 = smul.addr %s150, 128
      %s154 = sadd.s32 %s152, %s153
      %s155 = smul.addr %s154, 8
      %s156 = scalar_lea.vmem %s0, %s155
      %p157 = pneg %p48
      %p158 = pneg %p45
      %p159 = scmp.lt.s32.totalorder %s17, 0
      %s160 = scalar_select %p159, %s17, 0
      %s161 = smul.addr %s160, 8
      %s162 = scalar_lea.vmem %s1, %s161
      %p163 = pneg %p74
      %p164 = pneg %p71
      %p165 = pneg %p102
      %p166 = pneg %p99
      %s167 = smul.u32 32, %s18
      %p168 = scmp.lt.s32.totalorder %s17, 0
      %s169 = scalar_select %p168, %s17, 0
      %p170 = scmp.lt.s32.totalorder %s167, 127
      %s171 = scalar_select %p170, %s167, 127
      %s172 = smul.addr %s169, 128
      %s173 = sadd.s32 %s171, %s172
      %s174 = smul.addr %s173, 8
      %s175 = scalar_lea.vmem %s2, %s174
      %s176 = smul.u32 32, %s18
      %p177 = scmp.lt.s32.totalorder %s17, 0
      %s178 = scalar_select %p177, %s17, 0
      %p179 = scmp.lt.s32.totalorder %s176, 127
      %s180 = scalar_select %p179, %s176, 127
      %s181 = smul.addr %s178, 128
      %s182 = sadd.s32 %s180, %s181
      %s183 = smul.addr %s182, 8
      %s184 = scalar_lea.vmem %s0, %s183
      %s185 = smul.u32 32, %s18
      %p186 = scmp.lt.s32.totalorder %s17, 0
      %s187 = scalar_select %p186, %s17, 0
      %s188 = smul.addr %s187, 8
      %s189 = scalar_lea.vmem %s1, %s188
      %s190 = smul.u32 32, %s18
      %p191 = scmp.lt.s32.totalorder %s17, 0
      %s192 = scalar_select %p191, %s17, 0
      %p193 = scmp.lt.s32.totalorder %s190, 127
      %s194 = scalar_select %p193, %s190, 127
      %s195 = smul.addr %s192, 128
      %s196 = sadd.s32 %s194, %s195
      %s197 = smul.addr %s196, 8
      %s198 = scalar_lea.vmem %s2, %s197
      %s199 = smul.u32 32, %s18
      %v200 = vld [vmem:[%s184] sm:$0x3f]
      %v201 = vld [vmem:[%s184 + $0x8] sm:$0x3f]
      %v202 = vld [vmem:[%s184 + $0x10] sm:$0x3f]
      %v203 = vld [vmem:[%s184 + $0x18] sm:$0x3f]
      %v204 = vld [vmem:[%s184 + $0x20] sm:$0x3f]
      %v205 = vld [vmem:[%s184 + $0x28] sm:$0x3f]
      %v206 = vld [vmem:[%s184 + $0x30] sm:$0x3f]
      %v207 = vld [vmem:[%s184 + $0x38] sm:$0x3f]
      %v208 = vld [vmem:[%s184 + $0x40] sm:$0x3f]
      %v209 = vld [vmem:[%s184 + $0x48] sm:$0x3f]
      %v210 = vld [vmem:[%s184 + $0x50] sm:$0x3f]
      %v211 = vld [vmem:[%s184 + $0x58] sm:$0x3f]
      %v212 = vld [vmem:[%s184 + $0x60] sm:$0x3f]
      %v213 = vld [vmem:[%s184 + $0x68] sm:$0x3f]
      %v214 = vld [vmem:[%s184 + $0x70] sm:$0x3f]
      %v215 = vld [vmem:[%s184 + $0x78] sm:$0x3f]
      %v216 = vld [vmem:[%s184 + $0x80] sm:$0x3f]
      %v217 = vld [vmem:[%s184 + $0x88] sm:$0x3f]
      %v218 = vld [vmem:[%s184 + $0x90] sm:$0x3f]
      %v219 = vld [vmem:[%s184 + $0x98] sm:$0x3f]
      %v220 = vld [vmem:[%s184 + $0xa0] sm:$0x3f]
      %v221 = vld [vmem:[%s184 + $0xa8] sm:$0x3f]
      %v222 = vld [vmem:[%s184 + $0xb0] sm:$0x3f]
      %v223 = vld [vmem:[%s184 + $0xb8] sm:$0x3f]
      %v224 = vld [vmem:[%s184 + $0xc0] sm:$0x3f]
      %v225 = vld [vmem:[%s184 + $0xc8] sm:$0x3f]
      %v226 = vld [vmem:[%s184 + $0xd0] sm:$0x3f]
      %v227 = vld [vmem:[%s184 + $0xd8] sm:$0x3f]
      %v228 = vld [vmem:[%s184 + $0xe0] sm:$0x3f]
      %v229 = vld [vmem:[%s184 + $0xe8] sm:$0x3f]
      %v230 = vld [vmem:[%s184 + $0xf0] sm:$0x3f]
      %v231 = vld [vmem:[%s184 + $0xf8] sm:$0x3f]
      %v232 = vld [vmem:[%s189] sm:$0x3f]
      %234 = vset.pattern.permute.xlu0 0
      %235 = vperm.xlu0 %234, %v232
      %v236 = vpop.permute.xlu0 %235
      %v238 = vmul.f32 %v200, %v236
      %v239 = vmul.f32 %v201, %v236
      %v240 = vmul.f32 %v202, %v236
      %v241 = vmul.f32 %v203, %v236
      %v242 = vmul.f32 %v204, %v236
      %v243 = vmul.f32 %v205, %v236
      %v244 = vmul.f32 %v206, %v236
      %v245 = vmul.f32 %v207, %v236
      %v246 = vmul.f32 %v208, %v236
      %v247 = vmul.f32 %v209, %v236
      %v248 = vmul.f32 %v210, %v236
      %v249 = vmul.f32 %v211, %v236
      %v250 = vmul.f32 %v212, %v236
      %v251 = vmul.f32 %v213, %v236
      %v252 = vmul.f32 %v214, %v236
      %v253 = vmul.f32 %v215, %v236
      %v254 = vmul.f32 %v216, %v236
      %v255 = vmul.f32 %v217, %v236
      %v256 = vmul.f32 %v218, %v236
      %v257 = vmul.f32 %v219, %v236
      %v258 = vmul.f32 %v220, %v236
      %v259 = vmul.f32 %v221, %v236
      %v260 = vmul.f32 %v222, %v236
      %v261 = vmul.f32 %v223, %v236
      %v262 = vmul.f32 %v224, %v236
      %v263 = vmul.f32 %v225, %v236
      %v264 = vmul.f32 %v226, %v236
      %v265 = vmul.f32 %v227, %v236
      %v266 = vmul.f32 %v228, %v236
      %v267 = vmul.f32 %v229, %v236
      %v268 = vmul.f32 %v230, %v236
      %v269 = vmul.f32 %v231, %v236
      %270 = vset.pattern.permute.xlu0 1
      %271 = vperm.xlu0 %270, %v232
      %v272 = vpop.permute.xlu0 %271
      %v274 = vadd.f32 %v238, %v272
      %v275 = vadd.f32 %v239, %v272
      %v276 = vadd.f32 %v240, %v272
      %v277 = vadd.f32 %v241, %v272
      %v278 = vadd.f32 %v242, %v272
      %v279 = vadd.f32 %v243, %v272
      %v280 = vadd.f32 %v244, %v272
      %v281 = vadd.f32 %v245, %v272
      %v282 = vadd.f32 %v246, %v272
      %v283 = vadd.f32 %v247, %v272
      %v284 = vadd.f32 %v248, %v272
      %v285 = vadd.f32 %v249, %v272
      %v286 = vadd.f32 %v250, %v272
      %v287 = vadd.f32 %v251, %v272
      %v288 = vadd.f32 %v252, %v272
      %v289 = vadd.f32 %v253, %v272
      %v290 = vadd.f32 %v254, %v272
      %v291 = vadd.f32 %v255, %v272
      %v292 = vadd.f32 %v256, %v272
      %v293 = vadd.f32 %v257, %v272
      %v294 = vadd.f32 %v258, %v272
      %v295 = vadd.f32 %v259, %v272
      %v296 = vadd.f32 %v260, %v272
      %v297 = vadd.f32 %v261, %v272
      %v298 = vadd.f32 %v262, %v272
      %v299 = vadd.f32 %v263, %v272
      %v300 = vadd.f32 %v264, %v272
      %v301 = vadd.f32 %v265, %v272
      %v302 = vadd.f32 %v266, %v272
      %v303 = vadd.f32 %v267, %v272
      %v304 = vadd.f32 %v268, %v272
      %v305 = vadd.f32 %v269, %v272
      %306 = vst [vmem:[%s198] sm:$0x3f] %v274
      %307 = vst [vmem:[%s198 + $0x8] sm:$0x3f] %v275
      %308 = vst [vmem:[%s198 + $0x10] sm:$0x3f] %v276
      %309 = vst [vmem:[%s198 + $0x18] sm:$0x3f] %v277
      %310 = vst [vmem:[%s198 + $0x20] sm:$0x3f] %v278
      %311 = vst [vmem:[%s198 + $0x28] sm:$0x3f] %v279
      %312 = vst [vmem:[%s198 + $0x30] sm:$0x3f] %v280
      %313 = vst [vmem:[%s198 + $0x38] sm:$0x3f] %v281
      %314 = vst [vmem:[%s198 + $0x40] sm:$0x3f] %v282
      %315 = vst [vmem:[%s198 + $0x48] sm:$0x3f] %v283
      %316 = vst [vmem:[%s198 + $0x50] sm:$0x3f] %v284
      %317 = vst [vmem:[%s198 + $0x58] sm:$0x3f] %v285
      %318 = vst [vmem:[%s198 + $0x60] sm:$0x3f] %v286
      %319 = vst [vmem:[%s198 + $0x68] sm:$0x3f] %v287
      %320 = vst [vmem:[%s198 + $0x70] sm:$0x3f] %v288
      %321 = vst [vmem:[%s198 + $0x78] sm:$0x3f] %v289
      %322 = vst [vmem:[%s198 + $0x80] sm:$0x3f] %v290
      %323 = vst [vmem:[%s198 + $0x88] sm:$0x3f] %v291
      %324 = vst [vmem:[%s198 + $0x90] sm:$0x3f] %v292
      %325 = vst [vmem:[%s198 + $0x98] sm:$0x3f] %v293
      %326 = vst [vmem:[%s198 + $0xa0] sm:$0x3f] %v294
      %327 = vst [vmem:[%s198 + $0xa8] sm:$0x3f] %v295
      %328 = vst [vmem:[%s198 + $0xb0] sm:$0x3f] %v296
      %329 = vst [vmem:[%s198 + $0xb8] sm:$0x3f] %v297
      %330 = vst [vmem:[%s198 + $0xc0] sm:$0x3f] %v298
      %331 = vst [vmem:[%s198 + $0xc8] sm:$0x3f] %v299
      %332 = vst [vmem:[%s198 + $0xd0] sm:$0x3f] %v300
      %333 = vst [vmem:[%s198 + $0xd8] sm:$0x3f] %v301
      %334 = vst [vmem:[%s198 + $0xe0] sm:$0x3f] %v302
      %335 = vst [vmem:[%s198 + $0xe8] sm:$0x3f] %v303
      %336 = vst [vmem:[%s198 + $0xf0] sm:$0x3f] %v304
      %337 = vst [vmem:[%s198 + $0xf8] sm:$0x3f] %v305
      %s338 = smul.u32 32, %s18
      %p339 = scmp.lt.s32.totalorder %s17, 0
      %s340 = scalar_select %p339, %s17, 0
      %p341 = scmp.lt.s32.totalorder %s338, 127
      %s342 = scalar_select %p341, %s338, 127
      %s343 = smul.addr %s340, 128
      %s344 = sadd.s32 %s342, %s343
      %s345 = smul.addr %s344, 8
      %s346 = scalar_lea.vmem %s2, %s345
      // Predicated region
      $region29: #{_normalization_fwd.1} parent=27 // pred_check
        %p347 = pneg %p99
      $region30: #{_normalization_fwd.1} parent=27 // pred_check_branch
        %349 = sbr.rel (%p347) target = $region32
      $region31: #{_normalization_fwd.1} parent=27 // pred_region
        %s350 = smul.u32 32, %s18
      $region32: #{_normalization_fwd.1} parent=27 // pred_fallthru
        _
    $region28: #{_normalization_fwd.1} parent=5 // pred_fallthru
      _
    %p351 = scmp.le.s32.totalorder 2, %s8
    // Predicated region
    $region33: #{_normalization_fwd.1} parent=5 // pred_check
      %p352 = pneg %p351
    $region34: #{_normalization_fwd.1} parent=5 // pred_check_branch
      %354 = sbr.rel (%p352) target = $region36
    $region35: #{_normalization_fwd.1} parent=5 // pred_region
      %s355 = ssub.s32 %s8, 2
      // Predicated region
      $region37: #{_normalization_fwd.1} parent=35 // pred_check
        %p356 = pneg %p105
      $region38: #{_normalization_fwd.1} parent=35 // pred_check_branch
        %358 = sbr.rel (%p356) target = $region40
      $region39: #{_normalization_fwd.1} parent=35 // pred_region
        %s359 = smul.u32 32, %s20
        %p360 = scmp.lt.s32.totalorder %s19, 0
        %s361 = scalar_select %p360, %s19, 0
        %p362 = scmp.lt.s32.totalorder %s359, 127
        %s363 = scalar_select %p362, %s359, 127
        %s364 = smul.addr %s361, 128
        %s365 = sadd.s32 %s363, %s364
        %s366 = smul.addr %s365, 8
        %s367 = scalar_lea.vmem %s2, %s366
      $region40: #{_normalization_fwd.1} parent=35 // pred_fallthru
        _
    $region36: #{_normalization_fwd.1} parent=5 // pred_fallthru
      _
  $region6: #{_normalization_fwd.1} parent=0 // loop_footer
    %s12 = sadd.s32 1, %s8
  $region7: #{_normalization_fwd.1} parent=0 // loop_footer_branch
    %7 = sbr.rel target = $region3
  $region8: #{_normalization_fwd.1} parent=0 // loop_exit
    _

</llo_original>
